<compile_context>
chip_gen: v7x
topology: tpu7x:2x2x1
jax: 0.10.0
libtpu: 0.0.40
codegen_flags: <defaults>
</compile_context>

<pallas_src>
import functools
import math

import jax
import jax.numpy as jnp
import numpy as np
from jax.experimental import pallas as pl
from jax.experimental.pallas import tpu as pltpu


def _layernorm_kernel(x_ref, gamma_ref, beta_ref, o_ref, *, d, eps):
    """fold == 1 path: one logical row per kernel row (possibly with zero pad
    columns beyond d; gamma/beta are zero there, so pad outputs are zero)."""
    x = x_ref[...].astype(jnp.float32)
    gamma = gamma_ref[...].astype(jnp.float32)
    beta = beta_ref[...].astype(jnp.float32)

    # One-pass stats; zero pad columns contribute nothing to either sum.
    s1 = jnp.sum(x, axis=-1, keepdims=True)
    s2 = jnp.sum(x * x, axis=-1, keepdims=True)
    mean = s1 * (1.0 / d)
    # Unbiased (N-1) variance (torch.std semantics), clamped at 0.
    # TODO(synk): d == 1 yields NaN, same as torch.std of a single element.
    nm1 = 1.0 / (d - 1) if d > 1 else float("nan")
    var = jnp.maximum((s2 - s1 * mean) * nm1, 0.0)
    inv = pl.reciprocal(jnp.sqrt(var) + eps, approx=False)
    o_ref[...] = (gamma * (x - mean) * inv + beta).astype(o_ref.dtype)


def _layernorm_fold_kernel(x_ref, gamma_ref, beta_ref, seg_ref, segt_ref, o_ref,
                           *, d, eps):
    """Lane-folded path: each kernel row packs `fold` logical rows of padded
    width Dp (W = fold*Dp = 128).  Per-row stats use tiny block-diagonal 0/1
    segment matmuls (MXU; free while HBM-bound); the matrices are hoisted into
    the wrapper and arrive as constant VMEM inputs."""
    x = x_ref[...].astype(jnp.float32)
    gamma = gamma_ref[...].astype(jnp.float32)
    beta = beta_ref[...].astype(jnp.float32)
    seg = seg_ref[...]      # (W, fold) f32, block-diagonal ones
    seg_t = segt_ref[...]   # (fold, W) f32

    s1 = jnp.dot(x, seg, preferred_element_type=jnp.float32)       # (tile, fold)
    s2 = jnp.dot(x * x, seg, preferred_element_type=jnp.float32)   # (tile, fold)
    mean = s1 * (1.0 / d)
    nm1 = 1.0 / (d - 1) if d > 1 else float("nan")
    var = jnp.maximum((s2 - s1 * mean) * nm1, 0.0)
    inv = pl.reciprocal(jnp.sqrt(var) + eps, approx=False)         # (tile, fold)
    mean_b = jnp.dot(mean, seg_t, preferred_element_type=jnp.float32)  # (tile, W)
    inv_b = jnp.dot(inv, seg_t, preferred_element_type=jnp.float32)    # (tile, W)
    o_ref[...] = (gamma * (x - mean_b) * inv_b + beta).astype(o_ref.dtype)


def _round_up(v, m):
    return ((v + m - 1) // m) * m


def _next_pow2(v):
    return 1 << max(v - 1, 0).bit_length() if v > 1 else 1


def _num_tensorcores():
    """2 on megacore-style chips (v7x), else 1.  Best-effort; defaults to 1."""
    try:
        kind = jax.devices()[0].device_kind.lower()
    except Exception:
        return 1
    return 2 if ("v7" in kind or "7x" in kind) else 1


def _vmem_limit_bytes():
    """~32 MiB on v7x (64 MiB physical VMEM per core), 64 MiB on v5e/v6e."""
    try:
        cap = int(pltpu.get_tpu_info().vmem_capacity_bytes)
        return max(32 * 1024 * 1024, min(64 * 1024 * 1024, cap // 2))
    except Exception:
        return 32 * 1024 * 1024


def _choose_tile_rows(n_rows, per_row_bytes, sublane, num_cores):
    """Rows per block: sized from the f32 working set (~24 MiB budget covering
    double-buffered in+out blocks plus ~3 full-tile f32 temporaries), capped at
    8192 rows, multiple of the sublane count, never (much) larger than the
    array, and small enough on multicore chips that each TensorCore gets >= 2
    pipelined grid steps with balanced per-core step counts."""
    budget = 24 * 1024 * 1024
    t = budget // max(per_row_bytes, 1)
    t = max(sublane, min(8192, (t // sublane) * sublane))
    t = min(t, _round_up(n_rows, sublane))
    if num_cores > 1:
        min_steps = 2 * num_cores
        cap = (n_rows // min_steps // sublane) * sublane
        if cap >= sublane:
            t = min(t, cap)
        grid = -(-n_rows // t)
        if grid > 1 and grid % num_cores != 0:
            # try to balance the grid across cores
            t2 = max(sublane,
                     _round_up(-(-n_rows // _round_up(grid, num_cores)), sublane))
            if (-(-n_rows // t2)) % num_cores == 0:
                t = t2
    return t


def layer_norm(x, gamma, beta, eps=1e-6):
    """LayerNorm over the last dim: mean, UNBIASED std, eps added to the std
    (matches the reference PyTorch module; differs from torch.nn.LayerNorm)."""
    orig_shape = x.shape
    D = int(orig_shape[-1])
    rows = int(math.prod(orig_shape[:-1]))
    x2 = x.reshape(rows, D)

    itemsize = jnp.dtype(x.dtype).itemsize
    sublane = 8 if itemsize >= 4 else (16 if itemsize == 2 else 32)
    num_cores = _num_tensorcores()

    # Lane-dense layout: pad D up to Dp (divisor of 128 for D <= 128, multiple
    # of 128 otherwise) and pack fold = 128 // Dp logical rows per kernel row.
    if D <= 128:
        Dp = min(128, _next_pow2(D))
        fold = 128 // Dp
    else:
        Dp = _round_up(D, 128)
        fold = 1
    W = Dp * fold
    col_pad = Dp - D
    row_pad = (-rows) % fold          # only so the fold reshape stays row-major

    if row_pad or col_pad:
        x2 = jnp.pad(x2, ((0, row_pad), (0, col_pad)))
    n_frows = (rows + row_pad) // fold
    xf = x2.reshape(n_frows, W)       # free row-major reshape

    g = gamma.reshape(D)
    b = beta.reshape(D)
    if col_pad:
        g = jnp.pad(g, (0, col_pad))  # zeros: pad output columns become 0
        b = jnp.pad(b, (0, col_pad))
    gamma_t = jnp.tile(g, fold).reshape(1, W)
    beta_t = jnp.tile(b, fold).reshape(1, W)

    # Per-kernel-row VMEM footprint: double-buffered in + out blocks and ~3
    # full-tile f32 temporaries — size tiles from this, not the raw itemsize.
    per_row_bytes = 4 * W * itemsize + 3 * W * 4
    tile_f = _choose_tile_rows(n_frows, per_row_bytes, sublane, num_cores)
    grid = -(-n_frows // tile_f)      # ragged last block: Pallas masks writes

    x_spec = pl.BlockSpec((tile_f, W), lambda i: (i, 0))
    vec_spec = pl.BlockSpec((1, W), lambda i: (0, 0))

    if fold == 1:
        kernel = functools.partial(_layernorm_kernel, d=D, eps=eps)
        operands = (xf, gamma_t, beta_t)
        in_specs = [x_spec, vec_spec, vec_spec]
    else:
        # Block-diagonal segment matrices, built once as tiny host constants
        # and passed as constant-index VMEM inputs (hoisted out of the kernel).
        ridx = np.arange(W) // Dp
        seg_np = (ridx[:, None] == np.arange(fold)[None, :]).astype(np.float32)
        seg = jnp.asarray(seg_np)                              # (W, fold)
        seg_t = jnp.asarray(np.ascontiguousarray(seg_np.T))    # (fold, W)
        kernel = functools.partial(_layernorm_fold_kernel, d=D, eps=eps)
        operands = (xf, gamma_t, beta_t, seg, seg_t)
        in_specs = [x_spec, vec_spec, vec_spec,
                    pl.BlockSpec((W, fold), lambda i: (0, 0)),
                    pl.BlockSpec((fold, W), lambda i: (0, 0))]

    out = pl.pallas_call(
        kernel,
        out_shape=jax.ShapeDtypeStruct((n_frows, W), x.dtype),
        grid_spec=pltpu.PrefetchScalarGridSpec(
            num_scalar_prefetch=0,
            grid=(grid,),
            in_specs=in_specs,
            out_specs=pl.BlockSpec((tile_f, W), lambda i: (i, 0)),
        ),
        compiler_params=pltpu.CompilerParams(
            dimension_semantics=("parallel",),
            vmem_limit_bytes=_vmem_limit_bytes(),
        ),
    )(*operands)

    out = out.reshape(rows + row_pad, Dp)     # free row-major reshape
    if row_pad or col_pad:
        out = out[:rows, :D]
    return out.reshape(orig_shape)


if __name__ == "__main__":
    batch, seq, hidden = 2, 8, 32
    eps = 1e-6

    key = jax.random.PRNGKey(0)
    x = jax.random.normal(key, (batch, seq, hidden), dtype=jnp.float32)

    # deterministic parameter init matching nn.Parameter(torch.ones/zeros)
    gamma = jnp.ones((hidden,), dtype=jnp.float32)
    beta = jnp.zeros((hidden,), dtype=jnp.float32)

    out = layer_norm(x, gamma, beta, eps=eps)
    jax.block_until_ready(out)

    def ref_ln(xv, gv, bv, e):
        mean = jnp.mean(xv, axis=-1, keepdims=True)
        std = jnp.sqrt(jnp.sum((xv - mean) ** 2, axis=-1, keepdims=True)
                       / (xv.shape[-1] - 1))          # unbiased, eps on std
        return gv * (xv - mean) / (std + e) + bv

    ref = ref_ln(x, gamma, beta, eps)
    assert jnp.allclose(out, ref, atol=1e-5, rtol=1e-5), (
        float(jnp.max(jnp.abs(out - ref)))
    )

    # Extra tiny check covering the fold == 1 / ragged-last-block path.
    x2 = jax.random.normal(jax.random.PRNGKey(0), (2, 5, 128), dtype=jnp.float32)
    g2 = jnp.ones((128,), dtype=jnp.float32)
    b2 = jnp.zeros((128,), dtype=jnp.float32)
    out2 = layer_norm(x2, g2, b2, eps=eps)
    jax.block_until_ready(out2)
    ref2 = ref_ln(x2, g2, b2, eps)
    assert jnp.allclose(out2, ref2, atol=1e-5, rtol=1e-5), (
        float(jnp.max(jnp.abs(out2 - ref2)))
    )

    print("KERNEL_OK")
</pallas_src>

<mosaic_0001>
module attributes {stable_mosaic.version = 11 : i64} {
  func.func @_layernorm_fold_kernel(%arg0: i32, %arg1: memref<8x128xf32, #tpu.memory_space<vmem>>, %arg2: memref<1x128xf32, #tpu.memory_space<vmem>>, %arg3: memref<1x128xf32, #tpu.memory_space<vmem>>, %arg4: memref<128x4xf32, #tpu.memory_space<vmem>>, %arg5: memref<4x128xf32, #tpu.memory_space<vmem>>, %arg6: memref<8x128xf32, #tpu.memory_space<vmem>>) attributes {dimension_semantics = [#tpu.dimension_semantics<parallel>], iteration_bounds = array<i64: 1>, scalar_prefetch = 0 : i64, scratch_operands = 0 : i64, tpu.core_type = #tpu.core_type<tc>, window_params = [{transform_indices = @transform_0, window_bounds = array<i64: 8, 128>}, {pipeline_mode = #tpu.pipeline_mode<synchronous>, transform_indices = @transform_1, window_bounds = array<i64: 1, 128>}, {pipeline_mode = #tpu.pipeline_mode<synchronous>, transform_indices = @transform_2, window_bounds = array<i64: 1, 128>}, {pipeline_mode = #tpu.pipeline_mode<synchronous>, transform_indices = @transform_3, window_bounds = array<i64: 128, 4>}, {pipeline_mode = #tpu.pipeline_mode<synchronous>, transform_indices = @transform_4, window_bounds = array<i64: 4, 128>}, {transform_indices = @transform_5, window_bounds = array<i64: 8, 128>}]} {
    %c0 = arith.constant 0 : index
    %c0_0 = arith.constant 0 : index
    %0 = vector.load %arg1[%c0, %c0_0] : memref<8x128xf32, #tpu.memory_space<vmem>>, vector<8x128xf32>
    %c0_1 = arith.constant 0 : index
    %c0_2 = arith.constant 0 : index
    %1 = vector.load %arg2[%c0_1, %c0_2] : memref<1x128xf32, #tpu.memory_space<vmem>>, vector<1x128xf32>
    %c0_3 = arith.constant 0 : index
    %c0_4 = arith.constant 0 : index
    %2 = vector.load %arg3[%c0_3, %c0_4] : memref<1x128xf32, #tpu.memory_space<vmem>>, vector<1x128xf32>
    %c0_5 = arith.constant 0 : index
    %c0_6 = arith.constant 0 : index
    %3 = vector.load %arg4[%c0_5, %c0_6] : memref<128x4xf32, #tpu.memory_space<vmem>>, vector<128x4xf32>
    %c0_7 = arith.constant 0 : index
    %c0_8 = arith.constant 0 : index
    %4 = vector.load %arg5[%c0_7, %c0_8] : memref<4x128xf32, #tpu.memory_space<vmem>>, vector<4x128xf32>
    %cst = arith.constant dense<0.000000e+00> : vector<8x4xf32>
    %5 = tpu.matmul %0, %3, %cst {dimension_numbers = #tpu.dot_dimension_numbers<[1], [0], [0], [1], [0, 0, 1, 1], [], []>} : vector<8x128xf32>, vector<128x4xf32>, vector<8x4xf32> -> vector<8x4xf32>
    %6 = arith.mulf %0, %0 : vector<8x128xf32>
    %cst_9 = arith.constant dense<0.000000e+00> : vector<8x4xf32>
    %7 = tpu.matmul %6, %3, %cst_9 {dimension_numbers = #tpu.dot_dimension_numbers<[1], [0], [0], [1], [0, 0, 1, 1], [], []>} : vector<8x128xf32>, vector<128x4xf32>, vector<8x4xf32> -> vector<8x4xf32>
    %cst_10 = arith.constant 3.125000e-02 : f32
    %8 = vector.broadcast %cst_10 : f32 to vector<8x4xf32>
    %9 = arith.mulf %5, %8 : vector<8x4xf32>
    %10 = arith.mulf %5, %9 : vector<8x4xf32>
    %11 = arith.subf %7, %10 : vector<8x4xf32>
    %cst_11 = arith.constant 0.0322580636 : f32
    %12 = vector.broadcast %cst_11 : f32 to vector<8x4xf32>
    %13 = arith.mulf %11, %12 : vector<8x4xf32>
    %cst_12 = arith.constant 0.000000e+00 : f32
    %14 = vector.broadcast %cst_12 : f32 to vector<8x4xf32>
    %15 = arith.maximumf %13, %14 : vector<8x4xf32>
    %16 = math.sqrt %15 : vector<8x4xf32>
    %cst_13 = arith.constant 9.99999997E-7 : f32
    %17 = vector.broadcast %cst_13 : f32 to vector<8x4xf32>
    %18 = arith.addf %16, %17 : vector<8x4xf32>
    %19 = tpu.reciprocal %18 : vector<8x4xf32> -> vector<8x4xf32>
    %cst_14 = arith.constant dense<0.000000e+00> : vector<8x128xf32>
    %20 = tpu.matmul %9, %4, %cst_14 {dimension_numbers = #tpu.dot_dimension_numbers<[1], [0], [0], [1], [0, 0, 1, 1], [], []>} : vector<8x4xf32>, vector<4x128xf32>, vector<8x128xf32> -> vector<8x128xf32>
    %cst_15 = arith.constant dense<0.000000e+00> : vector<8x128xf32>
    %21 = tpu.matmul %19, %4, %cst_15 {dimension_numbers = #tpu.dot_dimension_numbers<[1], [0], [0], [1], [0, 0, 1, 1], [], []>} : vector<8x4xf32>, vector<4x128xf32>, vector<8x128xf32> -> vector<8x128xf32>
    %22 = arith.subf %0, %20 : vector<8x128xf32>
    %23 = vector.broadcast %1 : vector<1x128xf32> to vector<8x128xf32>
    %24 = arith.mulf %23, %22 : vector<8x128xf32>
    %25 = arith.mulf %24, %21 : vector<8x128xf32>
    %26 = vector.broadcast %2 : vector<1x128xf32> to vector<8x128xf32>
    %27 = arith.addf %25, %26 : vector<8x128xf32>
    %c0_16 = arith.constant 0 : index
    %c0_17 = arith.constant 0 : index
    %28 = vector.load %arg6[%c0_16, %c0_17] : memref<8x128xf32, #tpu.memory_space<vmem>>, vector<8x128xf32>
    tpu.vector_store %arg6[%c0_16, %c0_17], %27 {strides = array<i32>} : memref<8x128xf32, #tpu.memory_space<vmem>>, vector<8x128xf32>,
    return
  }
  func.func @transform_0(%arg0: i32) -> (i32, i32) {
    %c0_i32 = arith.constant 0 : i32
    %c0_i32_0 = arith.constant 0 : i32
    return %arg0, %c0_i32 : i32, i32
  }
  func.func @transform_1(%arg0: i32) -> (i32, i32) {
    %c0_i32 = arith.constant 0 : i32
    %c0_i32_0 = arith.constant 0 : i32
    %c0_i32_1 = arith.constant 0 : i32
    return %c0_i32, %c0_i32_0 : i32, i32
  }
  func.func @transform_2(%arg0: i32) -> (i32, i32) {
    %c0_i32 = arith.constant 0 : i32
    %c0_i32_0 = arith.constant 0 : i32
    %c0_i32_1 = arith.constant 0 : i32
    return %c0_i32, %c0_i32_0 : i32, i32
  }
  func.func @transform_3(%arg0: i32) -> (i32, i32) {
    %c0_i32 = arith.constant 0 : i32
    %c0_i32_0 = arith.constant 0 : i32
    %c0_i32_1 = arith.constant 0 : i32
    return %c0_i32, %c0_i32_0 : i32, i32
  }
  func.func @transform_4(%arg0: i32) -> (i32, i32) {
    %c0_i32 = arith.constant 0 : i32
    %c0_i32_0 = arith.constant 0 : i32
    %c0_i32_1 = arith.constant 0 : i32
    return %c0_i32, %c0_i32_0 : i32, i32
  }
  func.func @transform_5(%arg0: i32) -> (i32, i32) {
    %c0_i32 = arith.constant 0 : i32
    %c0_i32_0 = arith.constant 0 : i32
    return %arg0, %c0_i32 : i32, i32
  }
}

</mosaic_0001>

<llo_original>
// kernel: tpu_custom_call.1
$region0: #{tpu_custom_call.1}
  #allocation0 [shape = 'u32[]', space=smem, size = 0x4, offset = 0x4, fixed_abs, tag = 'smem constant byte address 0x4 - core index']
  #allocation1 [shape = 'u32[144,128]{1,0:T(1,128)}', space=vmem, size = 0x12000, scoped, tag = 'internal scratch']
  %s0 = inlined_call_operand.vmem [shape: f32[4,128], index: 0, kind: input, shape index: {}]
  %s1 = inlined_call_operand.vmem [shape: f32[1,128], index: 1, kind: input, shape index: {}]
  %s2 = inlined_call_operand.vmem [shape: f32[1,128], index: 2, kind: input, shape index: {}]
  %s3 = inlined_call_operand.vmem [shape: f32[128,4], index: 3, kind: input, shape index: {}]
  %s4 = inlined_call_operand.vmem [shape: f32[4,128], index: 4, kind: input, shape index: {}]
  %s5 = inlined_call_operand.hbm [shape: f32[4,128], index: 5, kind: output, shape index: {}]
  %s6 = sld [smem:[#allocation0]]
  $region30: #{tpu_custom_call.1} parent=0
    _
  %s8 = ssub.s32 1, %s6
  %s9 = scalar_select 0, %s8, %s6
  $region1: #{tpu_custom_call.1} parent=0
    #allocation2 [shape = 'u8[4096]{0}', space=vmem, size = 0x1000, scoped, tag = 'output window, operand 0, single buffered']
    #allocation3 [shape = 's32[1]{0}', space=sflag, size = 0x4, scoped, tag = 'scoped memory for tpu_custom_call.1']
    %10 = vsyncpa [#allocation3], 0
    // Predicated region
    $region2: #{tpu_custom_call.1} parent=1 // pred_check
      _
    $region3: #{tpu_custom_call.1} parent=1 // pred_check_branch
      %12 = sbr.rel (0) target = $region5
    $region4: #{tpu_custom_call.1} parent=1 // pred_region
      _
    $region5: #{tpu_custom_call.1} parent=1 // pred_fallthru
      _
    // Predicated region
    $region6: #{tpu_custom_call.1} parent=1 // pred_check
      _
    $region7: #{tpu_custom_call.1} parent=1 // pred_check_branch
      %14 = sbr.rel (0) target = $region9
    $region8: #{tpu_custom_call.1} parent=1 // pred_region
      _
    $region9: #{tpu_custom_call.1} parent=1 // pred_fallthru
      _
    // Predicated region
    $region10: #{tpu_custom_call.1} parent=1 // pred_check
      _
    $region11: #{tpu_custom_call.1} parent=1 // pred_check_branch
      %16 = sbr.rel (0) target = $region13
    $region12: #{tpu_custom_call.1} parent=1 // pred_region
      _
    $region13: #{tpu_custom_call.1} parent=1 // pred_fallthru
      _
    // Predicated region
    $region14: #{tpu_custom_call.1} parent=1 // pred_check
      _
    $region15: #{tpu_custom_call.1} parent=1 // pred_check_branch
      %18 = sbr.rel (0) target = $region17
    $region16: #{tpu_custom_call.1} parent=1 // pred_region
      _
    $region17: #{tpu_custom_call.1} parent=1 // pred_fallthru
      _
    // Predicated region
    $region18: #{tpu_custom_call.1} parent=1 // pred_check
      _
    $region19: #{tpu_custom_call.1} parent=1 // pred_check_branch
      %20 = sbr.rel (0) target = $region21
    $region20: #{tpu_custom_call.1} parent=1 // pred_region
      _
    $region21: #{tpu_custom_call.1} parent=1 // pred_fallthru
      _
    %v21 = vld [vmem:[%s0] sm:$0xff]
    %v22 = vld [vmem:[%s1] sm:$0x1]
    %v23 = vld [vmem:[%s2] sm:$0x1]
    %v24 = vld [vmem:[%s3] sm:$0xff]
    %v25 = vld [vmem:[%s3 + $0x8] sm:$0xff]
    %v26 = vld [vmem:[%s3 + $0x10] sm:$0xff]
    %v27 = vld [vmem:[%s3 + $0x18] sm:$0xff]
    %v28 = vld [vmem:[%s3 + $0x20] sm:$0xff]
    %v29 = vld [vmem:[%s3 + $0x28] sm:$0xff]
    %v30 = vld [vmem:[%s3 + $0x30] sm:$0xff]
    %v31 = vld [vmem:[%s3 + $0x38] sm:$0xff]
    %v32 = vld [vmem:[%s3 + $0x40] sm:$0xff]
    %v33 = vld [vmem:[%s3 + $0x48] sm:$0xff]
    %v34 = vld [vmem:[%s3 + $0x50] sm:$0xff]
    %v35 = vld [vmem:[%s3 + $0x58] sm:$0xff]
    %v36 = vld [vmem:[%s3 + $0x60] sm:$0xff]
    %v37 = vld [vmem:[%s3 + $0x68] sm:$0xff]
    %v38 = vld [vmem:[%s3 + $0x70] sm:$0xff]
    %v39 = vld [vmem:[%s3 + $0x78] sm:$0xff]
    %v40 = vld [vmem:[%s4] sm:$0xf]
    %41 = vmatprep.subr.mxu0 0.0
    %42 = vmatpush1.msra.mxu0 %v24
    %43 = vmatprep.subr.mxu0 0.0
    %44 = vmatpush1.msra.mxu0 %v25
    %45 = vmatprep.subr.mxu0 0.0
    %46 = vmatpush1.msra.mxu0 %v26
    %47 = vmatprep.subr.mxu0 0.0
    %48 = vmatpush1.msra.mxu0 %v27
    %49 = vmatprep.subr.mxu0 0.0
    %50 = vmatpush1.msra.mxu0 %v28
    %51 = vmatprep.subr.mxu0 0.0
    %52 = vmatpush1.msra.mxu0 %v29
    %53 = vmatprep.subr.mxu0 0.0
    %54 = vmatpush1.msra.mxu0 %v30
    %55 = vmatprep.subr.mxu0 0.0
    %56 = vmatpush1.msra.mxu0 %v31
    %57 = vmatprep.subr.mxu0 0.0
    %58 = vmatpush1.msra.mxu0 %v32
    %59 = vmatprep.subr.mxu0 0.0
    %60 = vmatpush1.msra.mxu0 %v33
    %61 = vmatprep.subr.mxu0 0.0
    %62 = vmatpush1.msra.mxu0 %v34
    %63 = vmatprep.subr.mxu0 0.0
    %64 = vmatpush1.msra.mxu0 %v35
    %65 = vmatprep.subr.mxu0 0.0
    %66 = vmatpush1.msra.mxu0 %v36
    %67 = vmatprep.subr.mxu0 0.0
    %68 = vmatpush1.msra.mxu0 %v37
    %69 = vmatprep.subr.mxu0 0.0
    %70 = vmatpush1.msra.mxu0 %v38
    %71 = vmatprep.subr.mxu0 0.0
    %72 = vmatpush1.msra.mxu0 %v39
    %73 = vmatprep.subr.mxu0 0.0
    %74 = vmatpush1.msra.mxu0 0.0
    %75 = vmatprep.subr.mxu0 0.0
    %76 = vmatpush1.msra.mxu0 0.0
    %77 = vmatprep.subr.mxu0 0.0
    %78 = vmatpush1.msra.mxu0 0.0
    %79 = vmatprep.subr.mxu0 0.0
    %80 = vmatpush1.msra.mxu0 0.0
    %81 = vmatprep.subr.mxu0 0.0
    %82 = vmatpush1.msra.mxu0 0.0
    %83 = vmatprep.subr.mxu0 0.0
    %84 = vmatpush1.msra.mxu0 0.0
    %85 = vmatprep.subr.mxu0 0.0
    %86 = vmatpush1.msra.mxu0 0.0
    %87 = vmatprep.subr.mxu0 0.0
    %88 = vmatpush1.msra.mxu0 0.0
    %89 = vmatprep.subr.mxu0 0.0
    %90 = vmatpush1.msra.mxu0 0.0
    %91 = vmatprep.subr.mxu0 0.0
    %92 = vmatpush1.msra.mxu0 0.0
    %93 = vmatprep.subr.mxu0 0.0
    %94 = vmatpush1.msra.mxu0 0.0
    %95 = vmatprep.subr.mxu0 0.0
    %96 = vmatpush1.msra.mxu0 0.0
    %97 = vmatprep.subr.mxu0 0.0
    %98 = vmatpush1.msra.mxu0 0.0
    %99 = vmatprep.subr.mxu0 0.0
    %100 = vmatpush1.msra.mxu0 0.0
    %101 = vmatprep.subr.mxu0 0.0
    %102 = vmatpush1.msra.mxu0 0.0
    %103 = vmatprep.subr.mxu0 0.0
    %104 = vmatpush1.msra.mxu0 0.0
    %105 = vmatprep.mubr.f32.mxu0 0.0
    %106 = vmatmul.mubr.f32.gmra.mrb[0].mxu0 %v21
    %v107 = vpop.f32.mrb[0].mxu0
    %v108 = vadd.f32 0.0, %v107
    %v109 = vpop.f32.mrb[0].mxu0
    %110 = vdwg.mxu0
    %v111 = vmul.f32 %v21, %v21
    %112 = vmatprep.subr.mxu0 0.0
    %113 = vmatpush1.msra.mxu0 %v24
    %114 = vmatprep.subr.mxu0 0.0
    %115 = vmatpush1.msra.mxu0 %v25
    %116 = vmatprep.subr.mxu0 0.0
    %117 = vmatpush1.msra.mxu0 %v26
    %118 = vmatprep.subr.mxu0 0.0
    %119 = vmatpush1.msra.mxu0 %v27
    %120 = vmatprep.subr.mxu0 0.0
    %121 = vmatpush1.msra.mxu0 %v28
    %122 = vmatprep.subr.mxu0 0.0
    %123 = vmatpush1.msra.mxu0 %v29
    %124 = vmatprep.subr.mxu0 0.0
    %125 = vmatpush1.msra.mxu0 %v30
    %126 = vmatprep.subr.mxu0 0.0
    %127 = vmatpush1.msra.mxu0 %v31
    %128 = vmatprep.subr.mxu0 0.0
    %129 = vmatpush1.msra.mxu0 %v32
    %130 = vmatprep.subr.mxu0 0.0
    %131 = vmatpush1.msra.mxu0 %v33
    %132 = vmatprep.subr.mxu0 0.0
    %133 = vmatpush1.msra.mxu0 %v34
    %134 = vmatprep.subr.mxu0 0.0
    %135 = vmatpush1.msra.mxu0 %v35
    %136 = vmatprep.subr.mxu0 0.0
    %137 = vmatpush1.msra.mxu0 %v36
    %138 = vmatprep.subr.mxu0 0.0
    %139 = vmatpush1.msra.mxu0 %v37
    %140 = vmatprep.subr.mxu0 0.0
    %141 = vmatpush1.msra.mxu0 %v38
    %142 = vmatprep.subr.mxu0 0.0
    %143 = vmatpush1.msra.mxu0 %v39
    %144 = vmatprep.subr.mxu0 0.0
    %145 = vmatpush1.msra.mxu0 0.0
    %146 = vmatprep.subr.mxu0 0.0
    %147 = vmatpush1.msra.mxu0 0.0
    %148 = vmatprep.subr.mxu0 0.0
    %149 = vmatpush1.msra.mxu0 0.0
    %150 = vmatprep.subr.mxu0 0.0
    %151 = vmatpush1.msra.mxu0 0.0
    %152 = vmatprep.subr.mxu0 0.0
    %153 = vmatpush1.msra.mxu0 0.0
    %154 = vmatprep.subr.mxu0 0.0
    %155 = vmatpush1.msra.mxu0 0.0
    %156 = vmatprep.subr.mxu0 0.0
    %157 = vmatpush1.msra.mxu0 0.0
    %158 = vmatprep.subr.mxu0 0.0
    %159 = vmatpush1.msra.mxu0 0.0
    %160 = vmatprep.subr.mxu0 0.0
    %161 = vmatpush1.msra.mxu0 0.0
    %162 = vmatprep.subr.mxu0 0.0
    %163 = vmatpush1.msra.mxu0 0.0
    %164 = vmatprep.subr.mxu0 0.0
    %165 = vmatpush1.msra.mxu0 0.0
    %166 = vmatprep.subr.mxu0 0.0
    %167 = vmatpush1.msra.mxu0 0.0
    %168 = vmatprep.subr.mxu0 0.0
    %169 = vmatpush1.msra.mxu0 0.0
    %170 = vmatprep.subr.mxu0 0.0
    %171 = vmatpush1.msra.mxu0 0.0
    %172 = vmatprep.subr.mxu0 0.0
    %173 = vmatpush1.msra.mxu0 0.0
    %174 = vmatprep.subr.mxu0 0.0
    %175 = vmatpush1.msra.mxu0 0.0
    %176 = vmatprep.mubr.f32.mxu0 0.0
    %177 = vmatmul.mubr.f32.gmra.mrb[0].mxu0 %v111
    %v178 = vpop.f32.mrb[0].mxu0
    %v179 = vadd.f32 0.0, %v178
    %v180 = vpop.f32.mrb[0].mxu0
    %181 = vdwg.mxu0
    %v182 = vmul.f32 %v108, 0.03125
    %v183 = vmul.f32 %v108, %v182
    %v184 = vsub.f32 %v179, %v183
    %v185 = vmul.f32 %v184, 0.032258064
    %v186 = vmax.f32 %v185, 0.0
    %v187 = vrsqrt.pop %v186
    %v188 = vmul.f32 %v186, %v187
    %vm189 = vcmp.eq.f32.partialorder %v186, inf
    %v190 = vsel %vm189, %v186, %v188
    %vm191 = vcmp.eq.f32.partialorder %v186, 0.0
    %v192 = vand.u32 %v186, 2147483648
    %v193 = vsel %vm191, %v192, %v190
    %v194 = vadd.f32 %v193, 1e-06
    %v195 = vrcp.pop %v194
    %vm196 = vcmask 31744
    %v198 = vsel %vm196, %v182, 0
    %vm200 = vcmask 1043456
    %v202 = vsel %vm200, %v40, 0
    %204 = vmatprep.subr.mxu0 0.0
    %205 = vmatpush1.msra.mxu0 %v202
    %206 = vmatprep.subr.mxu0 0.0
    %207 = vmatpush1.msra.mxu0 0.0
    %208 = vmatprep.subr.mxu0 0.0
    %209 = vmatpush1.msra.mxu0 0.0
    %210 = vmatprep.subr.mxu0 0.0
    %211 = vmatpush1.msra.mxu0 0.0
    %212 = vmatprep.subr.mxu0 0.0
    %213 = vmatpush1.msra.mxu0 0.0
    %214 = vmatprep.subr.mxu0 0.0
    %215 = vmatpush1.msra.mxu0 0.0
    %216 = vmatprep.subr.mxu0 0.0
    %217 = vmatpush1.msra.mxu0 0.0
    %218 = vmatprep.subr.mxu0 0.0
    %219 = vmatpush1.msra.mxu0 0.0
    %220 = vmatprep.subr.mxu0 0.0
    %221 = vmatpush1.msra.mxu0 0.0
    %222 = vmatprep.subr.mxu0 0.0
    %223 = vmatpush1.msra.mxu0 0.0
    %224 = vmatprep.subr.mxu0 0.0
    %225 = vmatpush1.msra.mxu0 0.0
    %226 = vmatprep.subr.mxu0 0.0
    %227 = vmatpush1.msra.mxu0 0.0
    %228 = vmatprep.subr.mxu0 0.0
    %229 = vmatpush1.msra.mxu0 0.0
    %230 = vmatprep.subr.mxu0 0.0
    %231 = vmatpush1.msra.mxu0 0.0
    %232 = vmatprep.subr.mxu0 0.0
    %233 = vmatpush1.msra.mxu0 0.0
    %234 = vmatprep.subr.mxu0 0.0
    %235 = vmatpush1.msra.mxu0 0.0
    %236 = vmatprep.subr.mxu0 0.0
    %237 = vmatpush1.msra.mxu0 0.0
    %238 = vmatprep.subr.mxu0 0.0
    %239 = vmatpush1.msra.mxu0 0.0
    %240 = vmatprep.subr.mxu0 0.0
    %241 = vmatpush1.msra.mxu0 0.0
    %242 = vmatprep.subr.mxu0 0.0
    %243 = vmatpush1.msra.mxu0 0.0
    %244 = vmatprep.subr.mxu0 0.0
    %245 = vmatpush1.msra.mxu0 0.0
    %246 = vmatprep.subr.mxu0 0.0
    %247 = vmatpush1.msra.mxu0 0.0
    %248 = vmatprep.subr.mxu0 0.0
    %249 = vmatpush1.msra.mxu0 0.0
    %250 = vmatprep.subr.mxu0 0.0
    %251 = vmatpush1.msra.mxu0 0.0
    %252 = vmatprep.subr.mxu0 0.0
    %253 = vmatpush1.msra.mxu0 0.0
    %254 = vmatprep.subr.mxu0 0.0
    %255 = vmatpush1.msra.mxu0 0.0
    %256 = vmatprep.subr.mxu0 0.0
    %257 = vmatpush1.msra.mxu0 0.0
    %258 = vmatprep.subr.mxu0 0.0
    %259 = vmatpush1.msra.mxu0 0.0
    %260 = vmatprep.subr.mxu0 0.0
    %261 = vmatpush1.msra.mxu0 0.0
    %262 = vmatprep.subr.mxu0 0.0
    %263 = vmatpush1.msra.mxu0 0.0
    %264 = vmatprep.subr.mxu0 0.0
    %265 = vmatpush1.msra.mxu0 0.0
    %266 = vmatprep.subr.mxu0 0.0
    %267 = vmatpush1.msra.mxu0 0.0
    %268 = vmatprep.mubr.f32.mxu0 0.0
    %269 = vmatmul.mubr.f32.gmra.mrb[0].mxu0 %v198
    %v270 = vpop.f32.mrb[0].mxu0
    %v271 = vadd.f32 0.0, %v270
    %v272 = vpop.f32.mrb[0].mxu0
    %273 = vdwg.mxu0
    %v275 = vsel %vm196, %v195, 0
    %277 = vmatprep.subr.mxu0 0.0
    %278 = vmatpush1.msra.mxu0 %v202
    %279 = vmatprep.subr.mxu0 0.0
    %280 = vmatpush1.msra.mxu0 0.0
    %281 = vmatprep.subr.mxu0 0.0
    %282 = vmatpush1.msra.mxu0 0.0
    %283 = vmatprep.subr.mxu0 0.0
    %284 = vmatpush1.msra.mxu0 0.0
    %285 = vmatprep.subr.mxu0 0.0
    %286 = vmatpush1.msra.mxu0 0.0
    %287 = vmatprep.subr.mxu0 0.0
    %288 = vmatpush1.msra.mxu0 0.0
    %289 = vmatprep.subr.mxu0 0.0
    %290 = vmatpush1.msra.mxu0 0.0
    %291 = vmatprep.subr.mxu0 0.0
    %292 = vmatpush1.msra.mxu0 0.0
    %293 = vmatprep.subr.mxu0 0.0
    %294 = vmatpush1.msra.mxu0 0.0
    %295 = vmatprep.subr.mxu0 0.0
    %296 = vmatpush1.msra.mxu0 0.0
    %297 = vmatprep.subr.mxu0 0.0
    %298 = vmatpush1.msra.mxu0 0.0
    %299 = vmatprep.subr.mxu0 0.0
    %300 = vmatpush1.msra.mxu0 0.0
    %301 = vmatprep.subr.mxu0 0.0
    %302 = vmatpush1.msra.mxu0 0.0
    %303 = vmatprep.subr.mxu0 0.0
    %304 = vmatpush1.msra.mxu0 0.0
    %305 = vmatprep.subr.mxu0 0.0
    %306 = vmatpush1.msra.mxu0 0.0
    %307 = vmatprep.subr.mxu0 0.0
    %308 = vmatpush1.msra.mxu0 0.0
    %309 = vmatprep.subr.mxu0 0.0
    %310 = vmatpush1.msra.mxu0 0.0
    %311 = vmatprep.subr.mxu0 0.0
    %312 = vmatpush1.msra.mxu0 0.0
    %313 = vmatprep.subr.mxu0 0.0
    %314 = vmatpush1.msra.mxu0 0.0
    %315 = vmatprep.subr.mxu0 0.0
    %316 = vmatpush1.msra.mxu0 0.0
    %317 = vmatprep.subr.mxu0 0.0
    %318 = vmatpush1.msra.mxu0 0.0
    %319 = vmatprep.subr.mxu0 0.0
    %320 = vmatpush1.msra.mxu0 0.0
    %321 = vmatprep.subr.mxu0 0.0
    %322 = vmatpush1.msra.mxu0 0.0
    %323 = vmatprep.subr.mxu0 0.0
    %324 = vmatpush1.msra.mxu0 0.0
    %325 = vmatprep.subr.mxu0 0.0
    %326 = vmatpush1.msra.mxu0 0.0
    %327 = vmatprep.subr.mxu0 0.0
    %328 = vmatpush1.msra.mxu0 0.0
    %329 = vmatprep.subr.mxu0 0.0
    %330 = vmatpush1.msra.mxu0 0.0
    %331 = vmatprep.subr.mxu0 0.0
    %332 = vmatpush1.msra.mxu0 0.0
    %333 = vmatprep.subr.mxu0 0.0
    %334 = vmatpush1.msra.mxu0 0.0
    %335 = vmatprep.subr.mxu0 0.0
    %336 = vmatpush1.msra.mxu0 0.0
    %337 = vmatprep.subr.mxu0 0.0
    %338 = vmatpush1.msra.mxu0 0.0
    %339 = vmatprep.subr.mxu0 0.0
    %340 = vmatpush1.msra.mxu0 0.0
    %341 = vmatprep.mubr.f32.mxu0 0.0
    %342 = vmatmul.mubr.f32.gmra.mrb[0].mxu0 %v275
    %v343 = vpop.f32.mrb[0].mxu0
    %v344 = vadd.f32 0.0, %v343
    %v345 = vpop.f32.mrb[0].mxu0
    %346 = vdwg.mxu0
    %v347 = vsub.f32 %v21, %v271
    %v349 = vlaneseq
    %v350 = vshrl.u32 %v349, 7
    %v351 = vsub.s32 0, %v350
    %v352 = vrot.slane %v22, %v351
    %v354 = vmul.f32 %v352, %v347
    %v355 = vmul.f32 %v354, %v344
    %v357 = vlaneseq
    %v358 = vshrl.u32 %v357, 7
    %v359 = vsub.s32 0, %v358
    %v360 = vrot.slane %v23, %v359
    %v362 = vadd.f32 %v355, %v360
    %363 = vst [vmem:[#allocation2] sm:$0xff] %v362
    // Predicated region
    $region22: #{tpu_custom_call.1} parent=1 // pred_check
      _
    $region23: #{tpu_custom_call.1} parent=1 // pred_check_branch
      %365 = sbr.rel (0) target = $region25
    $region24: #{tpu_custom_call.1} parent=1 // pred_region
      %s367 = ssub.s32 128, 64
      %368 = vsyncadd [#allocation3], %s367
      %s369 = sshll.u32 [#allocation2], 4
      %s370 = int_to_ptr.vmem [resolvable:$true] %s369
      %375 = dma.vmem_to_hbm [thread:$0]  %s370, 64, %s5, [#allocation3], 64, 64, 4
    $region25: #{tpu_custom_call.1} parent=1 // pred_fallthru
      _
    // Predicated region
    $region26: #{tpu_custom_call.1} parent=1 // pred_check
      _
    $region27: #{tpu_custom_call.1} parent=1 // pred_check_branch
      %377 = sbr.rel (0) target = $region29
    $region28: #{tpu_custom_call.1} parent=1 // pred_region
      %378 = dma.done [#allocation3], 128
    $region29: #{tpu_custom_call.1} parent=1 // pred_fallthru
      _
    %379 = vsyncpa [#allocation3], 1

</llo_original>
